<compile_context>
chip_gen: v7x
topology: tpu7x:2x2x1
jax: 0.10.0
libtpu: 0.0.40
codegen_flags: <defaults>
</compile_context>

<pallas_src>
from typing import NamedTuple

import jax
import jax.numpy as jnp
from jax.experimental import pallas as pl
from jax.experimental.pallas import tpu as pltpu

SELU_ALPHA = 1.6732632423543772
SELU_SCALE = 1.0507009873554805

LANE = 128
SUBLANE = 8


def _selu(x):
    # Clamp the exp argument so the unselected branch never produces inf
    # (also keeps garbage rows of a ragged last tile from exploding).
    neg = SELU_ALPHA * (jnp.exp(jnp.minimum(x, 0.0)) - 1.0)
    return SELU_SCALE * jnp.where(x > 0, x, neg)


def _round_up(n, m):
    return ((n + m - 1) // m) * m


class PackedControllerParams(NamedTuple):
    weights: tuple  # depth x (k_pad, n_pad) arrays (bf16 by default)
    biases: tuple   # depth x (1, n_pad) f32 arrays
    in_dim: int
    out_dim: int


def pack_controller_params(params, weight_dtype=jnp.bfloat16):
    """One-time packing: per-layer lane-dense zero-padded slabs (NOT per-call)."""
    weights, biases = [], []
    in_dim = params[0][0].shape[0]
    out_dim = params[-1][0].shape[1]
    for w, b in params:
        din, dout = w.shape
        kp, np_ = _round_up(din, LANE), _round_up(dout, LANE)
        wp = jnp.zeros((kp, np_), weight_dtype).at[:din, :dout].set(
            w.astype(weight_dtype))
        bp = jnp.zeros((1, np_), jnp.float32).at[0, :dout].set(
            b.reshape(-1).astype(jnp.float32))
        weights.append(wp)
        biases.append(bp)
    return PackedControllerParams(tuple(weights), tuple(biases), in_dim, out_dim)


def _make_kernel(depth, num_input, num_output, k0_pad):
    pad_needed = (k0_pad != num_input)

    def kernel(*refs):
        x_ref = refs[0]
        w_refs = refs[1:1 + depth]
        b_refs = refs[1 + depth:1 + 2 * depth]
        o_ref = refs[1 + 2 * depth]

        if pad_needed:
            pad_ref = refs[1 + 2 * depth + 1]        # VMEM scratch (block_n, k0_pad)
            pad_ref[...] = jnp.zeros_like(pad_ref)   # zero padded lanes
            pad_ref[:, :num_input] = x_ref[...].astype(jnp.float32)
            h = pad_ref[...]
        else:
            h = x_ref[...].astype(jnp.float32)

        for l in range(depth):                       # static unroll (depth is compile-time)
            h = _selu(h)                             # f32 on VPU/EUP
            h = jnp.dot(h.astype(w_refs[l].dtype),   # bf16 feed to the MXU
                        w_refs[l][...],
                        preferred_element_type=jnp.float32)
            h = h + b_refs[l][...]                   # (1, n_pad) f32 broadcast

        o_ref[...] = h[:, :num_output].astype(o_ref.dtype)

    return kernel


def controller_net_forward(x, packed: PackedControllerParams, *, block_n=1024):
    """ControllerNet.forward as a single fused Pallas kernel (x: (N, num_input))."""
    N, num_input = x.shape
    assert num_input == packed.in_dim, (num_input, packed.in_dim)
    depth = len(packed.weights)
    num_output = packed.out_dim
    k0_pad = packed.weights[0].shape[0]

    # Batch tiling: for larger batches guarantee >=2 grid steps so the
    # "parallel" axis can shard across both TensorCores on v7x; clamp for
    # small inputs.  Ragged last tile is handled by Pallas (masked writes).
    if N > 256:
        block_n = min(block_n, _round_up((N + 1) // 2, 256))
    block_n = max(SUBLANE, min(block_n, _round_up(N, SUBLANE)))
    grid = (pl.cdiv(N, block_n),)

    kernel = _make_kernel(depth, num_input, num_output, k0_pad)

    w_specs = [pl.BlockSpec(w.shape, lambda i: (0, 0)) for w in packed.weights]
    b_specs = [pl.BlockSpec(b.shape, lambda i: (0, 0)) for b in packed.biases]

    scratch = []
    if k0_pad != num_input:
        scratch.append(pltpu.VMEM((block_n, k0_pad), jnp.float32))

    out = pl.pallas_call(
        kernel,
        out_shape=jax.ShapeDtypeStruct((N, num_output), x.dtype),
        grid=grid,
        in_specs=[pl.BlockSpec((block_n, num_input), lambda i: (i, 0))]
                 + w_specs + b_specs,
        out_specs=pl.BlockSpec((block_n, num_output), lambda i: (i, 0)),
        scratch_shapes=scratch,
        compiler_params=pltpu.CompilerParams(
            dimension_semantics=("parallel",)),
    )(x, *packed.weights, *packed.biases)
    return out


def init_controller_params(key, num_input, num_output, depth=3, hidden_dims=None):
    """Deterministic synthetic parameters matching nn.Linear shapes (stored (in, out))."""
    if hidden_dims is not None:
        assert len(hidden_dims) == depth - 1
        dims = [num_input] + list(hidden_dims) + [num_output]
    else:
        dims = [num_input] + [num_output] * depth
    params = []
    for i in range(depth):
        key, kw, kb = jax.random.split(key, 3)
        fan_in = dims[i]
        bound = 1.0 / float(jnp.sqrt(fan_in))
        w = jax.random.uniform(kw, (dims[i], dims[i + 1]),
                               minval=-bound, maxval=bound, dtype=jnp.float32)
        b = jax.random.uniform(kb, (dims[i + 1],),
                               minval=-bound, maxval=bound, dtype=jnp.float32)
        params.append((w, b))
    return params


def controller_net_reference(x, params):
    """Pure-JAX f32 reference for correctness checking (unpadded math)."""
    h = x.astype(jnp.float32)
    for w, b in params:
        h = _selu(h) @ w + b
    return h


if __name__ == "__main__":
    key = jax.random.PRNGKey(0)
    k_in, k_in2, k_par = jax.random.split(key, 3)

    num_input, num_output, depth = 32, 16, 3
    params = init_controller_params(k_par, num_input, num_output, depth=depth)
    packed = pack_controller_params(params)   # one-time packing (bf16 weights)

    # Small single-tile case.
    x_small = jax.random.normal(k_in, (8, num_input), dtype=jnp.float32)
    out_small = jax.block_until_ready(controller_net_forward(x_small, packed))
    ref_small = controller_net_reference(x_small, params)
    assert out_small.shape == (8, num_output), out_small.shape
    assert out_small.dtype == x_small.dtype
    assert jnp.allclose(out_small, ref_small, atol=3e-2, rtol=3e-2), \
        "small-batch mismatch vs reference"

    # Multi-tile case exercising the parallel batch grid + ragged last tile.
    x_big = jax.random.normal(k_in2, (300, num_input), dtype=jnp.float32)
    out_big = jax.block_until_ready(controller_net_forward(x_big, packed))
    ref_big = controller_net_reference(x_big, params)
    assert out_big.shape == (300, num_output), out_big.shape
    assert jnp.allclose(out_big, ref_big, atol=3e-2, rtol=3e-2), \
        "batched mismatch vs reference"

    # bf16 caller path: dtype preserved end-to-end, loose tolerance (bf16 I/O).
    x_bf16 = x_big.astype(jnp.bfloat16)
    out_bf16 = jax.block_until_ready(controller_net_forward(x_bf16, packed))
    assert out_bf16.shape == (300, num_output)
    assert out_bf16.dtype == jnp.bfloat16
    assert jnp.allclose(out_bf16.astype(jnp.float32), ref_big,
                        atol=1e-1, rtol=1e-1), "bf16-io mismatch vs reference"

    print("KERNEL_OK")
</pallas_src>

<mosaic_0001>
module attributes {stable_mosaic.version = 11 : i64} {
  func.func @kernel(%arg0: i32, %arg1: memref<8x32xf32, #tpu.memory_space<vmem>>, %arg2: memref<128x128xbf16, #tpu.memory_space<vmem>>, %arg3: memref<128x128xbf16, #tpu.memory_space<vmem>>, %arg4: memref<128x128xbf16, #tpu.memory_space<vmem>>, %arg5: memref<1x128xf32, #tpu.memory_space<vmem>>, %arg6: memref<1x128xf32, #tpu.memory_space<vmem>>, %arg7: memref<1x128xf32, #tpu.memory_space<vmem>>, %arg8: memref<8x16xf32, #tpu.memory_space<vmem>>, %arg9: memref<8x128xf32, #tpu.memory_space<vmem>>) attributes {dimension_semantics = [#tpu.dimension_semantics<parallel>], iteration_bounds = array<i64: 1>, scalar_prefetch = 0 : i64, scratch_operands = 1 : i64, tpu.core_type = #tpu.core_type<tc>, window_params = [{transform_indices = @transform_0, window_bounds = array<i64: 8, 32>}, {pipeline_mode = #tpu.pipeline_mode<synchronous>, transform_indices = @transform_1, window_bounds = array<i64: 128, 128>}, {pipeline_mode = #tpu.pipeline_mode<synchronous>, transform_indices = @transform_2, window_bounds = array<i64: 128, 128>}, {pipeline_mode = #tpu.pipeline_mode<synchronous>, transform_indices = @transform_3, window_bounds = array<i64: 128, 128>}, {pipeline_mode = #tpu.pipeline_mode<synchronous>, transform_indices = @transform_4, window_bounds = array<i64: 1, 128>}, {pipeline_mode = #tpu.pipeline_mode<synchronous>, transform_indices = @transform_5, window_bounds = array<i64: 1, 128>}, {pipeline_mode = #tpu.pipeline_mode<synchronous>, transform_indices = @transform_6, window_bounds = array<i64: 1, 128>}, {transform_indices = @transform_7, window_bounds = array<i64: 8, 16>}]} {
    %cst = arith.constant 0.000000e+00 : f32
    %0 = vector.broadcast %cst : f32 to vector<8x128xf32>
    %c0 = arith.constant 0 : index
    %c0_0 = arith.constant 0 : index
    %1 = vector.load %arg9[%c0, %c0_0] : memref<8x128xf32, #tpu.memory_space<vmem>>, vector<8x128xf32>
    tpu.vector_store %arg9[%c0, %c0_0], %0 {strides = array<i32>} : memref<8x128xf32, #tpu.memory_space<vmem>>, vector<8x128xf32>,
    %c0_1 = arith.constant 0 : index
    %c0_2 = arith.constant 0 : index
    %2 = vector.load %arg1[%c0_1, %c0_2] : memref<8x32xf32, #tpu.memory_space<vmem>>, vector<8x32xf32>
    %c0_3 = arith.constant 0 : index
    %c0_4 = arith.constant 0 : index
    %3 = vector.load %arg9[%c0_3, %c0_4] : memref<8x128xf32, #tpu.memory_space<vmem>>, vector<8x32xf32>
    tpu.vector_store %arg9[%c0_3, %c0_4], %2 {strides = array<i32>} : memref<8x128xf32, #tpu.memory_space<vmem>>, vector<8x32xf32>,
    %c0_5 = arith.constant 0 : index
    %c0_6 = arith.constant 0 : index
    %4 = vector.load %arg9[%c0_5, %c0_6] : memref<8x128xf32, #tpu.memory_space<vmem>>, vector<8x128xf32>
    %cst_7 = arith.constant 0.000000e+00 : f32
    %5 = vector.broadcast %cst_7 : f32 to vector<8x128xf32>
    %6 = arith.minimumf %4, %5 : vector<8x128xf32>
    %7 = math.exp %6 : vector<8x128xf32>
    %cst_8 = arith.constant 1.000000e+00 : f32
    %8 = vector.broadcast %cst_8 : f32 to vector<8x128xf32>
    %9 = arith.subf %7, %8 : vector<8x128xf32>
    %cst_9 = arith.constant 1.67326319 : f32
    %10 = vector.broadcast %cst_9 : f32 to vector<8x128xf32>
    %11 = arith.mulf %10, %9 : vector<8x128xf32>
    %cst_10 = arith.constant 0.000000e+00 : f32
    %12 = vector.broadcast %cst_10 : f32 to vector<8x128xf32>
    %13 = arith.cmpf ogt, %4, %12 : vector<8x128xf32>
    %14 = arith.select %13, %4, %11 : vector<8x128xi1>, vector<8x128xf32>
    %cst_11 = arith.constant 1.05070102 : f32
    %15 = vector.broadcast %cst_11 : f32 to vector<8x128xf32>
    %16 = arith.mulf %15, %14 : vector<8x128xf32>
    %17 = arith.truncf %16 : vector<8x128xf32> to vector<8x128xbf16>
    %c0_12 = arith.constant 0 : index
    %c0_13 = arith.constant 0 : index
    %18 = vector.load %arg2[%c0_12, %c0_13] : memref<128x128xbf16, #tpu.memory_space<vmem>>, vector<128x128xbf16>
    %cst_14 = arith.constant dense<0.000000e+00> : vector<8x128xf32>
    %19 = tpu.matmul %17, %18, %cst_14 {dimension_numbers = #tpu.dot_dimension_numbers<[1], [0], [0], [1], [0, 0, 1, 1], [], []>} : vector<8x128xbf16>, vector<128x128xbf16>, vector<8x128xf32> -> vector<8x128xf32>
    %c0_15 = arith.constant 0 : index
    %c0_16 = arith.constant 0 : index
    %20 = vector.load %arg5[%c0_15, %c0_16] : memref<1x128xf32, #tpu.memory_space<vmem>>, vector<1x128xf32>
    %21 = vector.broadcast %20 : vector<1x128xf32> to vector<8x128xf32>
    %22 = arith.addf %19, %21 : vector<8x128xf32>
    %cst_17 = arith.constant 0.000000e+00 : f32
    %23 = vector.broadcast %cst_17 : f32 to vector<8x128xf32>
    %24 = arith.minimumf %22, %23 : vector<8x128xf32>
    %25 = math.exp %24 : vector<8x128xf32>
    %cst_18 = arith.constant 1.000000e+00 : f32
    %26 = vector.broadcast %cst_18 : f32 to vector<8x128xf32>
    %27 = arith.subf %25, %26 : vector<8x128xf32>
    %cst_19 = arith.constant 1.67326319 : f32
    %28 = vector.broadcast %cst_19 : f32 to vector<8x128xf32>
    %29 = arith.mulf %28, %27 : vector<8x128xf32>
    %cst_20 = arith.constant 0.000000e+00 : f32
    %30 = vector.broadcast %cst_20 : f32 to vector<8x128xf32>
    %31 = arith.cmpf ogt, %22, %30 : vector<8x128xf32>
    %32 = arith.select %31, %22, %29 : vector<8x128xi1>, vector<8x128xf32>
    %cst_21 = arith.constant 1.05070102 : f32
    %33 = vector.broadcast %cst_21 : f32 to vector<8x128xf32>
    %34 = arith.mulf %33, %32 : vector<8x128xf32>
    %35 = arith.truncf %34 : vector<8x128xf32> to vector<8x128xbf16>
    %c0_22 = arith.constant 0 : index
    %c0_23 = arith.constant 0 : index
    %36 = vector.load %arg3[%c0_22, %c0_23] : memref<128x128xbf16, #tpu.memory_space<vmem>>, vector<128x128xbf16>
    %cst_24 = arith.constant dense<0.000000e+00> : vector<8x128xf32>
    %37 = tpu.matmul %35, %36, %cst_24 {dimension_numbers = #tpu.dot_dimension_numbers<[1], [0], [0], [1], [0, 0, 1, 1], [], []>} : vector<8x128xbf16>, vector<128x128xbf16>, vector<8x128xf32> -> vector<8x128xf32>
    %c0_25 = arith.constant 0 : index
    %c0_26 = arith.constant 0 : index
    %38 = vector.load %arg6[%c0_25, %c0_26] : memref<1x128xf32, #tpu.memory_space<vmem>>, vector<1x128xf32>
    %39 = vector.broadcast %38 : vector<1x128xf32> to vector<8x128xf32>
    %40 = arith.addf %37, %39 : vector<8x128xf32>
    %cst_27 = arith.constant 0.000000e+00 : f32
    %41 = vector.broadcast %cst_27 : f32 to vector<8x128xf32>
    %42 = arith.minimumf %40, %41 : vector<8x128xf32>
    %43 = math.exp %42 : vector<8x128xf32>
    %cst_28 = arith.constant 1.000000e+00 : f32
    %44 = vector.broadcast %cst_28 : f32 to vector<8x128xf32>
    %45 = arith.subf %43, %44 : vector<8x128xf32>
    %cst_29 = arith.constant 1.67326319 : f32
    %46 = vector.broadcast %cst_29 : f32 to vector<8x128xf32>
    %47 = arith.mulf %46, %45 : vector<8x128xf32>
    %cst_30 = arith.constant 0.000000e+00 : f32
    %48 = vector.broadcast %cst_30 : f32 to vector<8x128xf32>
    %49 = arith.cmpf ogt, %40, %48 : vector<8x128xf32>
    %50 = arith.select %49, %40, %47 : vector<8x128xi1>, vector<8x128xf32>
    %cst_31 = arith.constant 1.05070102 : f32
    %51 = vector.broadcast %cst_31 : f32 to vector<8x128xf32>
    %52 = arith.mulf %51, %50 : vector<8x128xf32>
    %53 = arith.truncf %52 : vector<8x128xf32> to vector<8x128xbf16>
    %c0_32 = arith.constant 0 : index
    %c0_33 = arith.constant 0 : index
    %54 = vector.load %arg4[%c0_32, %c0_33] : memref<128x128xbf16, #tpu.memory_space<vmem>>, vector<128x128xbf16>
    %cst_34 = arith.constant dense<0.000000e+00> : vector<8x128xf32>
    %55 = tpu.matmul %53, %54, %cst_34 {dimension_numbers = #tpu.dot_dimension_numbers<[1], [0], [0], [1], [0, 0, 1, 1], [], []>} : vector<8x128xbf16>, vector<128x128xbf16>, vector<8x128xf32> -> vector<8x128xf32>
    %c0_35 = arith.constant 0 : index
    %c0_36 = arith.constant 0 : index
    %56 = vector.load %arg7[%c0_35, %c0_36] : memref<1x128xf32, #tpu.memory_space<vmem>>, vector<1x128xf32>
    %57 = vector.broadcast %56 : vector<1x128xf32> to vector<8x128xf32>
    %58 = arith.addf %55, %57 : vector<8x128xf32>
    %59 = vector.extract_strided_slice %58 {offsets = [0, 0], sizes = [8, 16], strides = [1, 1]} : vector<8x128xf32> to vector<8x16xf32>
    %c0_37 = arith.constant 0 : index
    %c0_38 = arith.constant 0 : index
    %60 = vector.load %arg8[%c0_37, %c0_38] : memref<8x16xf32, #tpu.memory_space<vmem>>, vector<8x16xf32>
    tpu.vector_store %arg8[%c0_37, %c0_38], %59 {strides = array<i32>} : memref<8x16xf32, #tpu.memory_space<vmem>>, vector<8x16xf32>,
    return
  }
  func.func @transform_0(%arg0: i32) -> (i32, i32) {
    %c0_i32 = arith.constant 0 : i32
    %c0_i32_0 = arith.constant 0 : i32
    return %arg0, %c0_i32 : i32, i32
  }
  func.func @transform_1(%arg0: i32) -> (i32, i32) {
    %c0_i32 = arith.constant 0 : i32
    %c0_i32_0 = arith.constant 0 : i32
    %c0_i32_1 = arith.constant 0 : i32
    return %c0_i32, %c0_i32_0 : i32, i32
  }
  func.func @transform_2(%arg0: i32) -> (i32, i32) {
    %c0_i32 = arith.constant 0 : i32
    %c0_i32_0 = arith.constant 0 : i32
    %c0_i32_1 = arith.constant 0 : i32
    return %c0_i32, %c0_i32_0 : i32, i32
  }
  func.func @transform_3(%arg0: i32) -> (i32, i32) {
    %c0_i32 = arith.constant 0 : i32
    %c0_i32_0 = arith.constant 0 : i32
    %c0_i32_1 = arith.constant 0 : i32
    return %c0_i32, %c0_i32_0 : i32, i32
  }
  func.func @transform_4(%arg0: i32) -> (i32, i32) {
    %c0_i32 = arith.constant 0 : i32
    %c0_i32_0 = arith.constant 0 : i32
    %c0_i32_1 = arith.constant 0 : i32
    return %c0_i32, %c0_i32_0 : i32, i32
  }
  func.func @transform_5(%arg0: i32) -> (i32, i32) {
    %c0_i32 = arith.constant 0 : i32
    %c0_i32_0 = arith.constant 0 : i32
    %c0_i32_1 = arith.constant 0 : i32
    return %c0_i32, %c0_i32_0 : i32, i32
  }
  func.func @transform_6(%arg0: i32) -> (i32, i32) {
    %c0_i32 = arith.constant 0 : i32
    %c0_i32_0 = arith.constant 0 : i32
    %c0_i32_1 = arith.constant 0 : i32
    return %c0_i32, %c0_i32_0 : i32, i32
  }
  func.func @transform_7(%arg0: i32) -> (i32, i32) {
    %c0_i32 = arith.constant 0 : i32
    %c0_i32_0 = arith.constant 0 : i32
    return %arg0, %c0_i32 : i32, i32
  }
}

</mosaic_0001>

<llo_original>
// kernel: tpu_custom_call.1
$region0: #{tpu_custom_call.1}
  #allocation0 [shape = 'u32[]', space=smem, size = 0x4, offset = 0x4, fixed_abs, tag = 'smem constant byte address 0x4 - core index']
  #allocation1 [shape = 'u32[144,128]{1,0:T(1,128)}', space=vmem, size = 0x12000, scoped, tag = 'internal scratch']
  #allocation2 [shape = 'f32[8,128]{1,0:T(8,128)}', space=vmem, size = 0x1000, scoped, tag = 'scratch operand']
  %s0 = inlined_call_operand.hbm [shape: f32[8,32], index: 0, kind: input, shape index: {}]
  %s1 = inlined_call_operand.hbm [shape: bf16[128,128], index: 1, kind: input, shape index: {}]
  %s2 = inlined_call_operand.hbm [shape: bf16[128,128], index: 2, kind: input, shape index: {}]
  %s3 = inlined_call_operand.hbm [shape: bf16[128,128], index: 3, kind: input, shape index: {}]
  %s4 = inlined_call_operand.vmem [shape: f32[1,128], index: 4, kind: input, shape index: {}]
  %s5 = inlined_call_operand.vmem [shape: f32[1,128], index: 5, kind: input, shape index: {}]
  %s6 = inlined_call_operand.vmem [shape: f32[1,128], index: 6, kind: input, shape index: {}]
  %s7 = inlined_call_operand.hbm [shape: f32[8,16], index: 7, kind: output, shape index: {}]
  %s8 = sld [smem:[#allocation0]]
  $region54: #{tpu_custom_call.1} parent=0
    _
  %s10 = ssub.s32 1, %s8
  %s11 = scalar_select 0, %s10, %s8
  $region1: #{tpu_custom_call.1} parent=0
    #allocation3 [shape = 'u8[4096]{0}', space=vmem, size = 0x1000, scoped, tag = 'input window, operand 0, single buffered']
    #allocation4 [shape = 's32[1]{0}', space=sflag, size = 0x4, scoped, tag = 'scoped memory for tpu_custom_call.1']
    #allocation5 [shape = 's32[1]{0}', space=sflag, size = 0x4, scoped, tag = 'scoped memory for tpu_custom_call.1']
    #allocation6 [shape = 'u8[32768]{0}', space=vmem, size = 0x8000, scoped, tag = 'input window, operand 1, single buffered']
    #allocation7 [shape = 's32[1]{0}', space=sflag, size = 0x4, scoped, tag = 'scoped memory for tpu_custom_call.1']
    #allocation8 [shape = 'u8[32768]{0}', space=vmem, size = 0x8000, scoped, tag = 'input window, operand 2, single buffered']
    #allocation9 [shape = 'u8[32768]{0}', space=vmem, size = 0x8000, scoped, tag = 'input window, operand 3, single buffered']
    #allocation10 [shape = 's32[1]{0}', space=sflag, size = 0x4, scoped, tag = 'scoped memory for tpu_custom_call.1']
    #allocation11 [shape = 'u8[4096]{0}', space=vmem, size = 0x1000, scoped, tag = 'output window, operand 0, single buffered']
    %12 = vsyncpa [#allocation4], 0
    %13 = vsyncpa [#allocation7], 0
    %14 = vsyncpa [#allocation10], 0
    %15 = vsyncpa [#allocation5], 0
    // Predicated region
    $region2: #{tpu_custom_call.1} parent=1 // pred_check
      _
    $region3: #{tpu_custom_call.1} parent=1 // pred_check_branch
      %17 = sbr.rel (0) target = $region5
    $region4: #{tpu_custom_call.1} parent=1 // pred_region
      %s19 = ssub.s32 128, 128
      %20 = vsyncadd [#allocation4], %s19
      %s22 = sshll.u32 [#allocation3], 4
      %s23 = int_to_ptr.vmem [resolvable:$true] %s22
      %25 = dma.hbm_to_vmem [thread:$0]  %s0, 128, %s23, [#allocation4]
    $region5: #{tpu_custom_call.1} parent=1 // pred_fallthru
      _
    // Predicated region
    $region6: #{tpu_custom_call.1} parent=1 // pred_check
      _
    $region7: #{tpu_custom_call.1} parent=1 // pred_check_branch
      %27 = sbr.rel (0) target = $region9
    $region8: #{tpu_custom_call.1} parent=1 // pred_region
      %s29 = ssub.s32 1024, 1024
      %30 = vsyncadd [#allocation7], %s29
      %s31 = sshll.u32 [#allocation6], 4
      %s32 = int_to_ptr.vmem [resolvable:$true] %s31
      %37 = dma.hbm_to_vmem [thread:$0]  %s1, 1024, %s32, [#allocation7], 64, 64, 4
    $region9: #{tpu_custom_call.1} parent=1 // pred_fallthru
      _
    // Predicated region
    $region10: #{tpu_custom_call.1} parent=1 // pred_check
      _
    $region11: #{tpu_custom_call.1} parent=1 // pred_check_branch
      %39 = sbr.rel (0) target = $region13
    $region12: #{tpu_custom_call.1} parent=1 // pred_region
      %s41 = ssub.s32 1024, 1024
      %42 = vsyncadd [#allocation7], %s41
      %s43 = sshll.u32 [#allocation8], 4
      %s44 = int_to_ptr.vmem [resolvable:$true] %s43
      %49 = dma.hbm_to_vmem [thread:$0]  %s2, 1024, %s44, [#allocation7], 64, 64, 4
    $region13: #{tpu_custom_call.1} parent=1 // pred_fallthru
      _
    // Predicated region
    $region14: #{tpu_custom_call.1} parent=1 // pred_check
      _
    $region15: #{tpu_custom_call.1} parent=1 // pred_check_branch
      %51 = sbr.rel (0) target = $region17
    $region16: #{tpu_custom_call.1} parent=1 // pred_region
      %s53 = ssub.s32 1024, 1024
      %54 = vsyncadd [#allocation10], %s53
      %s55 = sshll.u32 [#allocation9], 4
      %s56 = int_to_ptr.vmem [resolvable:$true] %s55
      %61 = dma.hbm_to_vmem [thread:$0]  %s3, 1024, %s56, [#allocation10], 64, 64, 4
    $region17: #{tpu_custom_call.1} parent=1 // pred_fallthru
      _
    // Predicated region
    $region18: #{tpu_custom_call.1} parent=1 // pred_check
      _
    $region19: #{tpu_custom_call.1} parent=1 // pred_check_branch
      %63 = sbr.rel (0) target = $region21
    $region20: #{tpu_custom_call.1} parent=1 // pred_region
      _
    $region21: #{tpu_custom_call.1} parent=1 // pred_fallthru
      _
    // Predicated region
    $region22: #{tpu_custom_call.1} parent=1 // pred_check
      _
    $region23: #{tpu_custom_call.1} parent=1 // pred_check_branch
      %65 = sbr.rel (0) target = $region25
    $region24: #{tpu_custom_call.1} parent=1 // pred_region
      _
    $region25: #{tpu_custom_call.1} parent=1 // pred_fallthru
      _
    // Predicated region
    $region26: #{tpu_custom_call.1} parent=1 // pred_check
      _
    $region27: #{tpu_custom_call.1} parent=1 // pred_check_branch
      %67 = sbr.rel (0) target = $region29
    $region28: #{tpu_custom_call.1} parent=1 // pred_region
      _
    $region29: #{tpu_custom_call.1} parent=1 // pred_fallthru
      _
    // Predicated region
    $region30: #{tpu_custom_call.1} parent=1 // pred_check
      _
    $region31: #{tpu_custom_call.1} parent=1 // pred_check_branch
      %69 = sbr.rel (0) target = $region33
    $region32: #{tpu_custom_call.1} parent=1 // pred_region
      %70 = dma.done [#allocation4], 128
    $region33: #{tpu_custom_call.1} parent=1 // pred_fallthru
      _
    // Predicated region
    $region34: #{tpu_custom_call.1} parent=1 // pred_check
      _
    $region35: #{tpu_custom_call.1} parent=1 // pred_check_branch
      %72 = sbr.rel (0) target = $region37
    $region36: #{tpu_custom_call.1} parent=1 // pred_region
      %73 = dma.done [#allocation7], 1024
    $region37: #{tpu_custom_call.1} parent=1 // pred_fallthru
      _
    // Predicated region
    $region38: #{tpu_custom_call.1} parent=1 // pred_check
      _
    $region39: #{tpu_custom_call.1} parent=1 // pred_check_branch
      %75 = sbr.rel (0) target = $region41
    $region40: #{tpu_custom_call.1} parent=1 // pred_region
      %76 = dma.done [#allocation7], 1024
    $region41: #{tpu_custom_call.1} parent=1 // pred_fallthru
      _
    // Predicated region
    $region42: #{tpu_custom_call.1} parent=1 // pred_check
      _
    $region43: #{tpu_custom_call.1} parent=1 // pred_check_branch
      %78 = sbr.rel (0) target = $region45
    $region44: #{tpu_custom_call.1} parent=1 // pred_region
      %79 = dma.done [#allocation10], 1024
    $region45: #{tpu_custom_call.1} parent=1 // pred_fallthru
      _
    %81 = vst [vmem:[#allocation2] sm:$0xff] 0.0
    %v82 = vld [vmem:[#allocation3] sm:$0xff]
    %vm83 = vcmask 261120
    %84 = vst.msk [vmem:[#allocation2] sm:$0xff] %vm83, %v82
    %v85 = vld [vmem:[#allocation2] sm:$0xff]
    %v86 = vmin.f32 %v85, 0.0
    %v87 = vmul.f32 %v86, 1.442695
    %v88 = vpow.pop %v87
    %v89 = vsub.f32 %v88, 1.0
    %v90 = vmul.f32 %v89, 1.6732632
    %vm91 = vcmp.gt.f32.partialorder %v85, 0.0
    %v92 = vsel %vm91, %v85, %v90
    %v93 = vmul.f32 %v92, 1.050701
    %v94 = vpack.c.bf16 %v93, %v93
    %v95 = vld [vmem:[#allocation6] sm:$0xf]
    %v96 = vld [vmem:[#allocation6 + $0x4] sm:$0xf]
    %v97 = vld [vmem:[#allocation6 + $0x8] sm:$0xf]
    %v98 = vld [vmem:[#allocation6 + $0xc] sm:$0xf]
    %v99 = vld [vmem:[#allocation6 + $0x10] sm:$0xf]
    %v100 = vld [vmem:[#allocation6 + $0x14] sm:$0xf]
    %v101 = vld [vmem:[#allocation6 + $0x18] sm:$0xf]
    %v102 = vld [vmem:[#allocation6 + $0x1c] sm:$0xf]
    %v103 = vld [vmem:[#allocation6 + $0x20] sm:$0xf]
    %v104 = vld [vmem:[#allocation6 + $0x24] sm:$0xf]
    %v105 = vld [vmem:[#allocation6 + $0x28] sm:$0xf]
    %v106 = vld [vmem:[#allocation6 + $0x2c] sm:$0xf]
    %v107 = vld [vmem:[#allocation6 + $0x30] sm:$0xf]
    %v108 = vld [vmem:[#allocation6 + $0x34] sm:$0xf]
    %v109 = vld [vmem:[#allocation6 + $0x38] sm:$0xf]
    %v110 = vld [vmem:[#allocation6 + $0x3c] sm:$0xf]
    %v111 = vld [vmem:[%s4] sm:$0x1]
    %v113 = vlaneseq
    %v114 = vshrl.u32 %v113, 7
    %v115 = vsub.s32 0, %v114
    %v116 = vrot.slane %v111, %v115
    %v134 = vunpack.c.l.b16 %v95
    %v135 = vunpack.c.l.b16 %v96
    %v136 = vunpack.c.l.b16 %v97
    %v137 = vunpack.c.l.b16 %v98
    %v138 = vunpack.c.l.b16 %v99
    %v139 = vunpack.c.l.b16 %v100
    %v140 = vunpack.c.l.b16 %v101
    %v141 = vunpack.c.l.b16 %v102
    %v142 = vunpack.c.l.b16 %v103
    %v143 = vunpack.c.l.b16 %v104
    %v144 = vunpack.c.l.b16 %v105
    %v145 = vunpack.c.l.b16 %v106
    %v146 = vunpack.c.l.b16 %v107
    %v147 = vunpack.c.l.b16 %v108
    %v148 = vunpack.c.l.b16 %v109
    %v149 = vunpack.c.l.b16 %v110
    %v150 = vpack.c.b16 %v135, %v134
    %v151 = vpack.c.b16 %v137, %v136
    %v152 = vpack.c.b16 %v139, %v138
    %v153 = vpack.c.b16 %v141, %v140
    %v154 = vpack.c.b16 %v143, %v142
    %v155 = vpack.c.b16 %v145, %v144
    %v156 = vpack.c.b16 %v147, %v146
    %v157 = vpack.c.b16 %v149, %v148
    %166 = vmatprep.subr.bf16.mxu0 0
    %167 = vmatpush1.bf16.msra.mxu0 %v150
    %168 = vmatprep.subr.bf16.mxu0 0
    %169 = vmatpush1.bf16.msra.mxu0 %v151
    %170 = vmatprep.subr.bf16.mxu0 0
    %171 = vmatpush1.bf16.msra.mxu0 %v152
    %172 = vmatprep.subr.bf16.mxu0 0
    %173 = vmatpush1.bf16.msra.mxu0 %v153
    %174 = vmatprep.subr.bf16.mxu0 0
    %175 = vmatpush1.bf16.msra.mxu0 %v154
    %176 = vmatprep.subr.bf16.mxu0 0
    %177 = vmatpush1.bf16.msra.mxu0 %v155
    %178 = vmatprep.subr.bf16.mxu0 0
    %179 = vmatpush1.bf16.msra.mxu0 %v156
    %180 = vmatprep.subr.bf16.mxu0 0
    %181 = vmatpush1.bf16.msra.mxu0 %v157
    %182 = vmatprep.subr.bf16.mxu0 0
    %183 = vmatpush1.bf16.msra.mxu0 0
    %184 = vmatprep.subr.bf16.mxu0 0
    %185 = vmatpush1.bf16.msra.mxu0 0
    %186 = vmatprep.subr.bf16.mxu0 0
    %187 = vmatpush1.bf16.msra.mxu0 0
    %188 = vmatprep.subr.bf16.mxu0 0
    %189 = vmatpush1.bf16.msra.mxu0 0
    %190 = vmatprep.subr.bf16.mxu0 0
    %191 = vmatpush1.bf16.msra.mxu0 0
    %192 = vmatprep.subr.bf16.mxu0 0
    %193 = vmatpush1.bf16.msra.mxu0 0
    %194 = vmatprep.subr.bf16.mxu0 0
    %195 = vmatpush1.bf16.msra.mxu0 0
    %196 = vmatprep.subr.bf16.mxu0 0
    %197 = vmatpush1.bf16.msra.mxu0 0
    %198 = vmatprep.mubr.bf16.mxu0 0
    %199 = vmatmul.mubr.bf16.gmra.mrb[0].mxu0 %v94
    %v200 = vpop.f32.mrb[0].mxu0
    %v201 = vadd.f32 %v116, %v200
    %v202 = vpop.f32.mrb[0].mxu0
    %v203 = vpop.f32.mrb[0].mxu0
    %v204 = vpop.f32.mrb[0].mxu0
    %205 = vdwg.mxu0
    %v206 = vmin.f32 %v201, 0.0
    %v207 = vmul.f32 %v206, 1.442695
    %v208 = vpow.pop %v207
    %v209 = vsub.f32 %v208, 1.0
    %v210 = vmul.f32 %v209, 1.6732632
    %vm211 = vcmp.gt.f32.partialorder %v201, 0.0
    %v212 = vsel %vm211, %v201, %v210
    %v213 = vmul.f32 %v212, 1.050701
    %v214 = vpack.c.bf16 %v213, %v213
    %v215 = vld [vmem:[#allocation8] sm:$0xf]
    %v216 = vld [vmem:[#allocation8 + $0x4] sm:$0xf]
    %v217 = vld [vmem:[#allocation8 + $0x8] sm:$0xf]
    %v218 = vld [vmem:[#allocation8 + $0xc] sm:$0xf]
    %v219 = vld [vmem:[#allocation8 + $0x10] sm:$0xf]
    %v220 = vld [vmem:[#allocation8 + $0x14] sm:$0xf]
    %v221 = vld [vmem:[#allocation8 + $0x18] sm:$0xf]
    %v222 = vld [vmem:[#allocation8 + $0x1c] sm:$0xf]
    %v223 = vld [vmem:[#allocation8 + $0x20] sm:$0xf]
    %v224 = vld [vmem:[#allocation8 + $0x24] sm:$0xf]
    %v225 = vld [vmem:[#allocation8 + $0x28] sm:$0xf]
    %v226 = vld [vmem:[#allocation8 + $0x2c] sm:$0xf]
    %v227 = vld [vmem:[#allocation8 + $0x30] sm:$0xf]
    %v228 = vld [vmem:[#allocation8 + $0x34] sm:$0xf]
    %v229 = vld [vmem:[#allocation8 + $0x38] sm:$0xf]
    %v230 = vld [vmem:[#allocation8 + $0x3c] sm:$0xf]
    %v231 = vld [vmem:[%s5] sm:$0x1]
    %v233 = vlaneseq
    %v234 = vshrl.u32 %v233, 7
    %v235 = vsub.s32 0, %v234
    %v236 = vrot.slane %v231, %v235
    %v254 = vunpack.c.l.b16 %v215
    %v255 = vunpack.c.l.b16 %v216
    %v256 = vunpack.c.l.b16 %v217
    %v257 = vunpack.c.l.b16 %v218
    %v258 = vunpack.c.l.b16 %v219
    %v259 = vunpack.c.l.b16 %v220
    %v260 = vunpack.c.l.b16 %v221
    %v261 = vunpack.c.l.b16 %v222
    %v262 = vunpack.c.l.b16 %v223
    %v263 = vunpack.c.l.b16 %v224
    %v264 = vunpack.c.l.b16 %v225
    %v265 = vunpack.c.l.b16 %v226
    %v266 = vunpack.c.l.b16 %v227
    %v267 = vunpack.c.l.b16 %v228
    %v268 = vunpack.c.l.b16 %v229
    %v269 = vunpack.c.l.b16 %v230
    %v270 = vpack.c.b16 %v255, %v254
    %v271 = vpack.c.b16 %v257, %v256
    %v272 = vpack.c.b16 %v259, %v258
    %v273 = vpack.c.b16 %v261, %v260
    %v274 = vpack.c.b16 %v263, %v262
    %v275 = vpack.c.b16 %v265, %v264
    %v276 = vpack.c.b16 %v267, %v266
    %v277 = vpack.c.b16 %v269, %v268
    %286 = vmatprep.subr.bf16.mxu0 0
    %287 = vmatpush1.bf16.msra.mxu0 %v270
    %288 = vmatprep.subr.bf16.mxu0 0
    %289 = vmatpush1.bf16.msra.mxu0 %v271
    %290 = vmatprep.subr.bf16.mxu0 0
    %291 = vmatpush1.bf16.msra.mxu0 %v272
    %292 = vmatprep.subr.bf16.mxu0 0
    %293 = vmatpush1.bf16.msra.mxu0 %v273
    %294 = vmatprep.subr.bf16.mxu0 0
    %295 = vmatpush1.bf16.msra.mxu0 %v274
    %296 = vmatprep.subr.bf16.mxu0 0
    %297 = vmatpush1.bf16.msra.mxu0 %v275
    %298 = vmatprep.subr.bf16.mxu0 0
    %299 = vmatpush1.bf16.msra.mxu0 %v276
    %300 = vmatprep.subr.bf16.mxu0 0
    %301 = vmatpush1.bf16.msra.mxu0 %v277
    %302 = vmatprep.subr.bf16.mxu0 0
    %303 = vmatpush1.bf16.msra.mxu0 0
    %304 = vmatprep.subr.bf16.mxu0 0
    %305 = vmatpush1.bf16.msra.mxu0 0
    %306 = vmatprep.subr.bf16.mxu0 0
    %307 = vmatpush1.bf16.msra.mxu0 0
    %308 = vmatprep.subr.bf16.mxu0 0
    %309 = vmatpush1.bf16.msra.mxu0 0
    %310 = vmatprep.subr.bf16.mxu0 0
    %311 = vmatpush1.bf16.msra.mxu0 0
    %312 = vmatprep.subr.bf16.mxu0 0
    %313 = vmatpush1.bf16.msra.mxu0 0
    %314 = vmatprep.subr.bf16.mxu0 0
    %315 = vmatpush1.bf16.msra.mxu0 0
    %316 = vmatprep.subr.bf16.mxu0 0
    %317 = vmatpush1.bf16.msra.mxu0 0
    %318 = vmatprep.mubr.bf16.mxu0 0
    %319 = vmatmul.mubr.bf16.gmra.mrb[0].mxu0 %v214
    %v320 = vpop.f32.mrb[0].mxu0
    %v321 = vadd.f32 %v236, %v320
    %v322 = vpop.f32.mrb[0].mxu0
    %v323 = vpop.f32.mrb[0].mxu0
    %v324 = vpop.f32.mrb[0].mxu0
    %325 = vdwg.mxu0
    %v326 = vmin.f32 %v321, 0.0
    %v327 = vmul.f32 %v326, 1.442695
    %v328 = vpow.pop %v327
    %v329 = vsub.f32 %v328, 1.0
    %v330 = vmul.f32 %v329, 1.6732632
    %vm331 = vcmp.gt.f32.partialorder %v321, 0.0
    %v332 = vsel %vm331, %v321, %v330
    %v333 = vmul.f32 %v332, 1.050701
    %v334 = vpack.c.bf16 %v333, %v333
    %v335 = vld [vmem:[#allocation9] sm:$0xf]
    %v336 = vld [vmem:[#allocation9 + $0x4] sm:$0xf]
    %v337 = vld [vmem:[#allocation9 + $0x8] sm:$0xf]
    %v338 = vld [vmem:[#allocation9 + $0xc] sm:$0xf]
    %v339 = vld [vmem:[#allocation9 + $0x10] sm:$0xf]
    %v340 = vld [vmem:[#allocation9 + $0x14] sm:$0xf]
    %v341 = vld [vmem:[#allocation9 + $0x18] sm:$0xf]
    %v342 = vld [vmem:[#allocation9 + $0x1c] sm:$0xf]
    %v343 = vld [vmem:[#allocation9 + $0x20] sm:$0xf]
    %v344 = vld [vmem:[#allocation9 + $0x24] sm:$0xf]
    %v345 = vld [vmem:[#allocation9 + $0x28] sm:$0xf]
    %v346 = vld [vmem:[#allocation9 + $0x2c] sm:$0xf]
    %v347 = vld [vmem:[#allocation9 + $0x30] sm:$0xf]
    %v348 = vld [vmem:[#allocation9 + $0x34] sm:$0xf]
    %v349 = vld [vmem:[#allocation9 + $0x38] sm:$0xf]
    %v350 = vld [vmem:[#allocation9 + $0x3c] sm:$0xf]
    %v351 = vld [vmem:[%s6] sm:$0x1]
    %v353 = vlaneseq
    %v354 = vshrl.u32 %v353, 7
    %v355 = vsub.s32 0, %v354
    %v356 = vrot.slane %v351, %v355
    %v374 = vunpack.c.l.b16 %v335
    %v375 = vunpack.c.l.b16 %v336
    %v376 = vunpack.c.l.b16 %v337
    %v377 = vunpack.c.l.b16 %v338
    %v378 = vunpack.c.l.b16 %v339
    %v379 = vunpack.c.l.b16 %v340
    %v380 = vunpack.c.l.b16 %v341
    %v381 = vunpack.c.l.b16 %v342
    %v382 = vunpack.c.l.b16 %v343
    %v383 = vunpack.c.l.b16 %v344
    %v384 = vunpack.c.l.b16 %v345
    %v385 = vunpack.c.l.b16 %v346
    %v386 = vunpack.c.l.b16 %v347
    %v387 = vunpack.c.l.b16 %v348
    %v388 = vunpack.c.l.b16 %v349
    %v389 = vunpack.c.l.b16 %v350
    %v390 = vpack.c.b16 %v375, %v374
    %v391 = vpack.c.b16 %v377, %v376
    %v392 = vpack.c.b16 %v379, %v378
    %v393 = vpack.c.b16 %v381, %v380
    %v394 = vpack.c.b16 %v383, %v382
    %v395 = vpack.c.b16 %v385, %v384
    %v396 = vpack.c.b16 %v387, %v386
    %v397 = vpack.c.b16 %v389, %v388
    %406 = vmatprep.subr.bf16.mxu0 0
    %407 = vmatpush1.bf16.msra.mxu0 %v390
    %408 = vmatprep.subr.bf16.mxu0 0
    %409 = vmatpush1.bf16.msra.mxu0 %v391
    %410 = vmatprep.subr.bf16.mxu0 0
    %411 = vmatpush1.bf16.msra.mxu0 %v392
    %412 = vmatprep.subr.bf16.mxu0 0
    %413 = vmatpush1.bf16.msra.mxu0 %v393
    %414 = vmatprep.subr.bf16.mxu0 0
    %415 = vmatpush1.bf16.msra.mxu0 %v394
    %416 = vmatprep.subr.bf16.mxu0 0
    %417 = vmatpush1.bf16.msra.mxu0 %v395
    %418 = vmatprep.subr.bf16.mxu0 0
    %419 = vmatpush1.bf16.msra.mxu0 %v396
    %420 = vmatprep.subr.bf16.mxu0 0
    %421 = vmatpush1.bf16.msra.mxu0 %v397
    %422 = vmatprep.subr.bf16.mxu0 0
    %423 = vmatpush1.bf16.msra.mxu0 0
    %424 = vmatprep.subr.bf16.mxu0 0
    %425 = vmatpush1.bf16.msra.mxu0 0
    %426 = vmatprep.subr.bf16.mxu0 0
    %427 = vmatpush1.bf16.msra.mxu0 0
    %428 = vmatprep.subr.bf16.mxu0 0
    %429 = vmatpush1.bf16.msra.mxu0 0
    %430 = vmatprep.subr.bf16.mxu0 0
    %431 = vmatpush1.bf16.msra.mxu0 0
    %432 = vmatprep.subr.bf16.mxu0 0
    %433 = vmatpush1.bf16.msra.mxu0 0
    %434 = vmatprep.subr.bf16.mxu0 0
    %435 = vmatpush1.bf16.msra.mxu0 0
    %436 = vmatprep.subr.bf16.mxu0 0
    %437 = vmatpush1.bf16.msra.mxu0 0
    %438 = vmatprep.mubr.bf16.mxu0 0
    %439 = vmatmul.mubr.bf16.gmra.mrb[0].mxu0 %v334
    %v440 = vpop.f32.mrb[0].mxu0
    %v441 = vadd.f32 %v356, %v440
    %v442 = vpop.f32.mrb[0].mxu0
    %v443 = vpop.f32.mrb[0].mxu0
    %v444 = vpop.f32.mrb[0].mxu0
    %445 = vdwg.mxu0
    %vm446 = vcmask 130048
    %447 = vst.msk [vmem:[#allocation11] sm:$0xff] %vm446, %v441
    // Predicated region
    $region46: #{tpu_custom_call.1} parent=1 // pred_check
      _
    $region47: #{tpu_custom_call.1} parent=1 // pred_check_branch
      %449 = sbr.rel (0) target = $region49
    $region48: #{tpu_custom_call.1} parent=1 // pred_region
      %s451 = ssub.s32 128, 128
      %452 = vsyncadd [#allocation5], %s451
      %s454 = sshll.u32 [#allocation11], 4
      %s455 = int_to_ptr.vmem [resolvable:$true] %s454
      %457 = dma.vmem_to_hbm [thread:$0]  %s455, 128, %s7, [#allocation5]
    $region49: #{tpu_custom_call.1} parent=1 // pred_fallthru
      _
    // Predicated region
    $region50: #{tpu_custom_call.1} parent=1 // pred_check
      _
    $region51: #{tpu_custom_call.1} parent=1 // pred_check_branch
      %459 = sbr.rel (0) target = $region53
    $region52: #{tpu_custom_call.1} parent=1 // pred_region
      %460 = dma.done [#allocation5], 128
    $region53: #{tpu_custom_call.1} parent=1 // pred_fallthru
      _
    %461 = vsyncpa [#allocation4], 1
    %462 = vsyncpa [#allocation7], 1
    %463 = vsyncpa [#allocation10], 1
    %464 = vsyncpa [#allocation5], 1

</llo_original>
